<compile_context>
chip_gen: v7x
topology: tpu7x:2x2x1
jax: 0.10.0
libtpu: 0.0.40
codegen_flags: <defaults>
</compile_context>

<pallas_src>
import jax
import jax.numpy as jnp
from jax.experimental import pallas as pl
from jax.experimental.pallas import tpu as pltpu


def _lqc_kernel(wt_ref, xt_ref, out_ref):
    # y^T = W^T @ x^T   (lane axis = batch; single MXU push, unmasked stores)
    out_ref[...] = jnp.dot(
        wt_ref[...], xt_ref[...], preferred_element_type=jnp.float32
    ).astype(out_ref.dtype)


def _cost(batch, din, di):
    return pl.CostEstimate(
        flops=2 * batch * din * di,
        transcendentals=0,
        bytes_accessed=4 * (batch * din + din * di + batch * di),
    )


def _choose_tile(B, max_tb=2048):
    """Pick the batch (lane) tile.

    Multiple of 128 (lane width), capped at max_tb, and capped so the grid
    has >= 2 steps (v7x has 2 TensorCores to shard the 'parallel' axis
    across; on v5e/v6e this cap is neutral).  Returns None for tiny batches
    where the single-shot no-grid path is cheaper.
    """
    if B < 2 * 128:
        return None
    tb = 128 * (B // (2 * 128))
    return max(128, min(max_tb, tb))


def lqc_forward(required_state, plant_state, controll_mat, *, max_tb=2048):
    """y = cat([required_state, plant_state], dim=1) @ controll_mat, (B, Di)."""
    B, Dr = required_state.shape
    _, Dp = plant_state.shape
    Din, Di = controll_mat.shape
    assert Din == Dr + Dp

    # Wrapper-side layout plumbing (fuses in XLA): concat once and put the
    # batch on the lane (last) axis; present the weight as (Di, Din).
    x_t = jnp.concatenate([required_state, plant_state], axis=1).T  # (Din, B)
    w_t = controll_mat.T                                            # (Di, Din)

    tb = _choose_tile(B, max_tb)

    if tb is None:
        # Tiny batch: single invocation, no grid, no pipelining overhead.
        y_t = pl.pallas_call(
            _lqc_kernel,
            out_shape=jax.ShapeDtypeStruct((Di, B), jnp.float32),
            in_specs=[pl.BlockSpec(memory_space=pltpu.MemorySpace.VMEM)] * 2,
            out_specs=pl.BlockSpec(memory_space=pltpu.MemorySpace.VMEM),
            cost_estimate=_cost(B, Din, Di),
        )(w_t, x_t)
        return y_t.T

    # Pad the batch to a tile multiple (zero columns -> zero outputs, sliced
    # off afterwards).  This replaces the old "single-shot fallback" that
    # could blow VMEM for large, non-divisible B.
    n_blocks = pl.cdiv(B, tb)
    Bp = n_blocks * tb
    if Bp != B:
        x_t = jnp.pad(x_t, ((0, 0), (0, Bp - B)))

    y_t = pl.pallas_call(
        _lqc_kernel,
        out_shape=jax.ShapeDtypeStruct((Di, Bp), jnp.float32),
        grid=(n_blocks,),
        in_specs=[
            # Weight block: constant index -> VMEM-resident across all steps.
            pl.BlockSpec((Di, Din), lambda i: (0, 0)),
            # Activations: lane-dense (Din, tb) tiles along the batch axis.
            pl.BlockSpec((Din, tb), lambda i: (0, i)),
        ],
        out_specs=pl.BlockSpec((Di, tb), lambda i: (0, i)),
        compiler_params=pltpu.CompilerParams(
            dimension_semantics=("parallel",),
        ),
        cost_estimate=_cost(Bp, Din, Di),
    )(w_t, x_t)

    return y_t[:, :B].T


def _reference(required_state, plant_state, controll_mat):
    return jnp.concatenate([required_state, plant_state], axis=1) @ controll_mat


if __name__ == "__main__":
    key = jax.random.PRNGKey(0)
    k_w, k_r1, k_p1, k_r2, k_p2, k_r3, k_p3 = jax.random.split(key, 7)

    # Module config (small, consistent with the controller's forward).
    required_dim = 4
    plant_output_dim = 6
    plant_input_dim = 3
    init_range = 0.001

    controll_mat = init_range * jax.random.normal(
        k_w, (required_dim + plant_output_dim, plant_input_dim),
        dtype=jnp.float32)

    # --- Tiny batch: single-shot, no-grid path ---
    batch = 8
    req = jax.random.normal(k_r1, (batch, required_dim), dtype=jnp.float32)
    plant = jax.random.normal(k_p1, (batch, plant_output_dim), dtype=jnp.float32)

    y = jax.block_until_ready(lqc_forward(req, plant, controll_mat))
    y_ref = _reference(req, plant, controll_mat)
    assert y.shape == (batch, plant_input_dim)
    assert jnp.allclose(y, y_ref, atol=1e-5, rtol=1e-5)

    # --- Lane-dense tiled path: grid of >= 2 steps, resident weights ---
    big_batch = 512
    req_b = jax.random.normal(k_r2, (big_batch, required_dim), dtype=jnp.float32)
    plant_b = jax.random.normal(
        k_p2, (big_batch, plant_output_dim), dtype=jnp.float32)

    y_b = jax.block_until_ready(lqc_forward(req_b, plant_b, controll_mat))
    y_b_ref = _reference(req_b, plant_b, controll_mat)
    assert y_b.shape == (big_batch, plant_input_dim)
    assert jnp.allclose(y_b, y_b_ref, atol=1e-5, rtol=1e-5)

    # --- Non-tile-multiple batch: exercises zero-padding + slice-back ---
    odd_batch = 300
    req_c = jax.random.normal(k_r3, (odd_batch, required_dim), dtype=jnp.float32)
    plant_c = jax.random.normal(
        k_p3, (odd_batch, plant_output_dim), dtype=jnp.float32)

    y_c = jax.block_until_ready(lqc_forward(req_c, plant_c, controll_mat))
    y_c_ref = _reference(req_c, plant_c, controll_mat)
    assert y_c.shape == (odd_batch, plant_input_dim)
    assert jnp.allclose(y_c, y_c_ref, atol=1e-5, rtol=1e-5)

    print("KERNEL_OK")
</pallas_src>

<mosaic_0001>
module attributes {stable_mosaic.version = 11 : i64} {
  func.func @_lqc_kernel(%arg0: memref<3x10xf32, #tpu.memory_space<vmem>>, %arg1: memref<10x8xf32, #tpu.memory_space<vmem>>, %arg2: memref<3x8xf32, #tpu.memory_space<vmem>>) attributes {dimension_semantics = [], scalar_prefetch = 0 : i64, scratch_operands = 0 : i64, tpu.core_type = #tpu.core_type<tc>} {
    %c0 = arith.constant 0 : index
    %c0_0 = arith.constant 0 : index
    %0 = vector.load %arg0[%c0, %c0_0] : memref<3x10xf32, #tpu.memory_space<vmem>>, vector<3x10xf32>
    %c0_1 = arith.constant 0 : index
    %c0_2 = arith.constant 0 : index
    %1 = vector.load %arg1[%c0_1, %c0_2] : memref<10x8xf32, #tpu.memory_space<vmem>>, vector<10x8xf32>
    %cst = arith.constant dense<0.000000e+00> : vector<3x8xf32>
    %2 = tpu.matmul %0, %1, %cst {dimension_numbers = #tpu.dot_dimension_numbers<[1], [0], [0], [1], [0, 0, 1, 1], [], []>} : vector<3x10xf32>, vector<10x8xf32>, vector<3x8xf32> -> vector<3x8xf32>
    %c0_3 = arith.constant 0 : index
    %c0_4 = arith.constant 0 : index
    %3 = vector.load %arg2[%c0_3, %c0_4] : memref<3x8xf32, #tpu.memory_space<vmem>>, vector<3x8xf32>
    tpu.vector_store %arg2[%c0_3, %c0_4], %2 {strides = array<i32>} : memref<3x8xf32, #tpu.memory_space<vmem>>, vector<3x8xf32>,
    return
  }
}

</mosaic_0001>

<llo_original>
// kernel: tpu_custom_call.1
$region0: #{tpu_custom_call.1}
  #allocation0 [shape = 'u32[]', space=smem, size = 0x4, offset = 0x4, fixed_abs, tag = 'smem constant byte address 0x4 - core index']
  #allocation1 [shape = 'u32[144,128]{1,0:T(1,128)}', space=vmem, size = 0x12000, scoped, tag = 'internal scratch']
  %s0 = inlined_call_operand.vmem [shape: f32[3,10], index: 0, kind: input, shape index: {}]
  %s1 = inlined_call_operand.vmem [shape: f32[10,8], index: 1, kind: input, shape index: {}]
  %s2 = inlined_call_operand.hbm [shape: f32[3,8], index: 2, kind: output, shape index: {}]
  %s3 = sld [smem:[#allocation0]]
  $region18: #{tpu_custom_call.1} parent=0
    _
  %s5 = ssub.s32 1, %s3
  %s6 = scalar_select 0, %s5, %s3
  $region1: #{tpu_custom_call.1} parent=0
    #allocation2 [shape = 'u8[2048]{0}', space=vmem, size = 0x800, scoped, tag = 'output window, operand 0, single buffered']
    #allocation3 [shape = 's32[1]{0}', space=sflag, size = 0x4, scoped, tag = 'scoped memory for tpu_custom_call.1']
    %7 = vsyncpa [#allocation3], 0
    // Predicated region
    $region2: #{tpu_custom_call.1} parent=1 // pred_check
      _
    $region3: #{tpu_custom_call.1} parent=1 // pred_check_branch
      %9 = sbr.rel (0) target = $region5
    $region4: #{tpu_custom_call.1} parent=1 // pred_region
      _
    $region5: #{tpu_custom_call.1} parent=1 // pred_fallthru
      _
    // Predicated region
    $region6: #{tpu_custom_call.1} parent=1 // pred_check
      _
    $region7: #{tpu_custom_call.1} parent=1 // pred_check_branch
      %11 = sbr.rel (0) target = $region9
    $region8: #{tpu_custom_call.1} parent=1 // pred_region
      _
    $region9: #{tpu_custom_call.1} parent=1 // pred_fallthru
      _
    %v12 = vld [vmem:[%s0] sm:$0x7]
    %v13 = vld [vmem:[%s1] sm:$0xff]
    %v14 = vld [vmem:[%s1 + $0x8] sm:$0x3]
    %vm15 = vcmask 80896
    %v17 = vsel %vm15, %v12, 0
    %vm19 = vcmask 1041408
    %v21 = vsel %vm19, %v14, 0
    %23 = vmatprep.subr.mxu0 0.0
    %24 = vmatpush1.msra.mxu0 %v13
    %25 = vmatprep.subr.mxu0 0.0
    %26 = vmatpush1.msra.mxu0 %v21
    %27 = vmatprep.subr.mxu0 0.0
    %28 = vmatpush1.msra.mxu0 0.0
    %29 = vmatprep.subr.mxu0 0.0
    %30 = vmatpush1.msra.mxu0 0.0
    %31 = vmatprep.subr.mxu0 0.0
    %32 = vmatpush1.msra.mxu0 0.0
    %33 = vmatprep.subr.mxu0 0.0
    %34 = vmatpush1.msra.mxu0 0.0
    %35 = vmatprep.subr.mxu0 0.0
    %36 = vmatpush1.msra.mxu0 0.0
    %37 = vmatprep.subr.mxu0 0.0
    %38 = vmatpush1.msra.mxu0 0.0
    %39 = vmatprep.subr.mxu0 0.0
    %40 = vmatpush1.msra.mxu0 0.0
    %41 = vmatprep.subr.mxu0 0.0
    %42 = vmatpush1.msra.mxu0 0.0
    %43 = vmatprep.subr.mxu0 0.0
    %44 = vmatpush1.msra.mxu0 0.0
    %45 = vmatprep.subr.mxu0 0.0
    %46 = vmatpush1.msra.mxu0 0.0
    %47 = vmatprep.subr.mxu0 0.0
    %48 = vmatpush1.msra.mxu0 0.0
    %49 = vmatprep.subr.mxu0 0.0
    %50 = vmatpush1.msra.mxu0 0.0
    %51 = vmatprep.subr.mxu0 0.0
    %52 = vmatpush1.msra.mxu0 0.0
    %53 = vmatprep.subr.mxu0 0.0
    %54 = vmatpush1.msra.mxu0 0.0
    %55 = vmatprep.subr.mxu0 0.0
    %56 = vmatpush1.msra.mxu0 0.0
    %57 = vmatprep.subr.mxu0 0.0
    %58 = vmatpush1.msra.mxu0 0.0
    %59 = vmatprep.subr.mxu0 0.0
    %60 = vmatpush1.msra.mxu0 0.0
    %61 = vmatprep.subr.mxu0 0.0
    %62 = vmatpush1.msra.mxu0 0.0
    %63 = vmatprep.subr.mxu0 0.0
    %64 = vmatpush1.msra.mxu0 0.0
    %65 = vmatprep.subr.mxu0 0.0
    %66 = vmatpush1.msra.mxu0 0.0
    %67 = vmatprep.subr.mxu0 0.0
    %68 = vmatpush1.msra.mxu0 0.0
    %69 = vmatprep.subr.mxu0 0.0
    %70 = vmatpush1.msra.mxu0 0.0
    %71 = vmatprep.subr.mxu0 0.0
    %72 = vmatpush1.msra.mxu0 0.0
    %73 = vmatprep.subr.mxu0 0.0
    %74 = vmatpush1.msra.mxu0 0.0
    %75 = vmatprep.subr.mxu0 0.0
    %76 = vmatpush1.msra.mxu0 0.0
    %77 = vmatprep.subr.mxu0 0.0
    %78 = vmatpush1.msra.mxu0 0.0
    %79 = vmatprep.subr.mxu0 0.0
    %80 = vmatpush1.msra.mxu0 0.0
    %81 = vmatprep.subr.mxu0 0.0
    %82 = vmatpush1.msra.mxu0 0.0
    %83 = vmatprep.subr.mxu0 0.0
    %84 = vmatpush1.msra.mxu0 0.0
    %85 = vmatprep.subr.mxu0 0.0
    %86 = vmatpush1.msra.mxu0 0.0
    %87 = vmatprep.mubr.f32.mxu0 0.0
    %88 = vmatmul.mubr.f32.gmra.mrb[0].mxu0 %v17
    %v89 = vpop.f32.mrb[0].mxu0
    %v90 = vadd.f32 0.0, %v89
    %v91 = vpop.f32.mrb[0].mxu0
    %92 = vdwg.mxu0
    %vm93 = vcmask 59392
    %94 = vst.msk [vmem:[#allocation2] sm:$0x7] %vm93, %v90
    // Predicated region
    $region10: #{tpu_custom_call.1} parent=1 // pred_check
      _
    $region11: #{tpu_custom_call.1} parent=1 // pred_check_branch
      %96 = sbr.rel (0) target = $region13
    $region12: #{tpu_custom_call.1} parent=1 // pred_region
      %s98 = ssub.s32 64, 64
      %99 = vsyncadd [#allocation3], %s98
      %s101 = sshll.u32 [#allocation2], 4
      %s102 = int_to_ptr.vmem [resolvable:$true] %s101
      %104 = dma.vmem_to_hbm [thread:$0]  %s102, 64, %s2, [#allocation3]
    $region13: #{tpu_custom_call.1} parent=1 // pred_fallthru
      _
    // Predicated region
    $region14: #{tpu_custom_call.1} parent=1 // pred_check
      _
    $region15: #{tpu_custom_call.1} parent=1 // pred_check_branch
      %106 = sbr.rel (0) target = $region17
    $region16: #{tpu_custom_call.1} parent=1 // pred_region
      %107 = dma.done [#allocation3], 64
    $region17: #{tpu_custom_call.1} parent=1 // pred_fallthru
      _
    %108 = vsyncpa [#allocation3], 1

</llo_original>
